<compile_context>
chip_gen: v7x
topology: tpu7x:2x2x1
jax: 0.10.0
libtpu: 0.0.40
codegen_flags: <defaults>
</compile_context>

<pallas_src>
import jax
import jax.numpy as jnp
from jax import lax
from jax.experimental import pallas as pl
from jax.experimental.pallas import tpu as pltpu


def _round_up(v: int, m: int) -> int:
    return ((v + m - 1) // m) * m


def _make_cam_kernel(c_valid: int, c_pad: int, matmul_dtype, use_slab: bool):
    mask_cols = c_valid != c_pad

    def kernel(gamma_ref, x_ref, o_ref, energy_ref, attn_ref, *maybe_slab):
        slab_ref = maybe_slab[0] if use_slab else None
        phase = pl.program_id(1)
        n = pl.program_id(2)

        # ---- Phase 0: accumulate energy = x @ x^T over spatial tiles. ----
        @pl.when(jnp.logical_and(phase == 0, n == 0))
        def _init():
            energy_ref[...] = jnp.zeros_like(energy_ref)

        @pl.when(phase == 0)
        def _accumulate():
            x_blk = x_ref[0]                                   # (C, tn) f32
            if use_slab:
                # Stash the f32 block for phase 1 (exact residual, no second
                # HBM read of x).
                slab_ref[n] = x_blk
            xb = x_blk.astype(matmul_dtype)
            # NOTE: self-Gram contracts the lane dim of both operands; verify
            # with pl.lower_as_mlir that this hits the MXU transposed-operand
            # path rather than a per-tile vxpose if XLU ever binds.
            energy_ref[...] += lax.dot_general(                # f32 accumulate
                xb, xb, (((1,), (1,)), ((), ())),
                preferred_element_type=jnp.float32)

        # ---- Phase 1, first tile: channel softmax.
        # softmax(rowmax(E) - E) == exp(rowmin(E) - E) / sum  (one reduce). ----
        @pl.when(jnp.logical_and(phase == 1, n == 0))
        def _softmax():
            energy = energy_ref[...]                           # (C, C) f32
            if mask_cols:
                col_ok = (lax.broadcasted_iota(jnp.int32, energy.shape, 1)
                          < c_valid)
                energy = jnp.where(col_ok, energy, jnp.inf)    # exclude pad cols
            e_min = jnp.min(energy, axis=-1, keepdims=True)
            p = jnp.exp(e_min - energy)                        # pad cols -> 0
            denom = jnp.sum(p, axis=-1, keepdims=True)
            attn = p * pl.reciprocal(denom, approx=True)       # EUP reciprocal
            # Fold gamma into the attention matrix once per batch; the phase-1
            # epilogue is then a single add + cast.
            attn_ref[...] = (gamma_ref[0] * attn).astype(attn_ref.dtype)

        # ---- Phase 1: out = (gamma*attn) @ x_tile + x_tile ----
        @pl.when(phase == 1)
        def _apply():
            if use_slab:
                x_t = slab_ref[n]                              # (C, tn) f32
            else:
                x_t = x_ref[0]                                 # (C, tn) f32
            out = jnp.dot(attn_ref[...], x_t.astype(matmul_dtype),
                          preferred_element_type=jnp.float32)
            o_ref[0] = (out + x_t).astype(o_ref.dtype)

    return kernel


def cam_module(x, gamma, *, tile_n=None, matmul_dtype=jnp.bfloat16,
               use_slab=None):
    """Channel attention. x: (B, C, H, W) float32, gamma: (1,) float32."""
    B, C, H, W = x.shape
    N = H * W
    x_flat = x.reshape(B, C, N)

    # Alignment / padding for the (8, 128) register tile.
    c_pad = _round_up(C, 8)
    n_align = _round_up(N, 128)

    # Per-generation VMEM budget: 75% of physical per-core VMEM
    # (~48 MiB on v7x, ~96 MiB on v5e/v6e); conservative fallback otherwise.
    try:
        vmem_cap = int(pltpu.get_tpu_info().vmem_capacity_bytes * 0.75)
    except Exception:  # pragma: no cover - non-TPU tracing / old runtime
        vmem_cap = 48 * 1024 * 1024

    # Tile sizing: target >= 1 MiB per (c_pad, tile_n) f32 block (scaled
    # inversely with c_pad) so small-C shapes are not per-step-overhead bound;
    # cap so double-buffered in/out blocks stay well inside the VMEM budget.
    if tile_n is None:
        tile_n = max(512, (1 << 20) // (c_pad * 4))
    tile_n = _round_up(tile_n, 128)
    max_blk_bytes = max(128 * c_pad * 4, vmem_cap // 8)
    tile_n = min(tile_n, max(128, (max_blk_bytes // (c_pad * 4)) // 128 * 128))
    tile_n = min(tile_n, n_align)
    n_pad = _round_up(N, tile_n)
    num_n = n_pad // tile_n

    if c_pad != C or n_pad != N:
        x_flat = jnp.pad(x_flat, ((0, 0), (0, c_pad - C), (0, n_pad - N)))

    # Working-set estimates: double-buffered in/out blocks + bf16 copies,
    # (C,C) energy/attention scratch + softmax temporaries, optional f32 slab.
    blk_bytes = c_pad * tile_n * 4
    cc_bytes = c_pad * c_pad * 4
    slab_bytes = c_pad * n_pad * 4
    stream_need = 6 * blk_bytes + 8 * cc_bytes
    slab_need = stream_need + slab_bytes
    if use_slab is None:
        use_slab = slab_need <= int(vmem_cap * 0.9)
    need = slab_need if use_slab else stream_need
    vmem_limit_bytes = int(min(vmem_cap, max(2 * need, 16 * 1024 * 1024)))

    if use_slab:
        # Phase 1 reads x from the VMEM slab; park the x window on the last
        # phase-0 tile during phase 1 so no block is re-fetched from HBM.
        x_index = lambda b, p, n: (b, 0, n * (1 - p) + (num_n - 1) * p)
    else:
        x_index = lambda b, p, n: (b, 0, n)

    scratch_shapes = [
        pltpu.VMEM((c_pad, c_pad), jnp.float32),        # energy accumulator
        pltpu.VMEM((c_pad, c_pad), matmul_dtype),       # gamma * attention
    ]
    if use_slab:
        scratch_shapes.append(pltpu.VMEM((num_n, c_pad, tile_n), x.dtype))

    kernel = _make_cam_kernel(C, c_pad, matmul_dtype, use_slab)

    out_flat = pl.pallas_call(
        kernel,
        out_shape=jax.ShapeDtypeStruct((B, c_pad, n_pad), x.dtype),
        grid_spec=pltpu.PrefetchScalarGridSpec(
            num_scalar_prefetch=0,
            # (batch, phase, spatial tile): phase 0 builds the Gram matrix,
            # phase 1 applies the attention tile by tile.
            grid=(B, 2, num_n),
            in_specs=[
                pl.BlockSpec(memory_space=pltpu.MemorySpace.SMEM),      # gamma
                pl.BlockSpec((1, c_pad, tile_n), x_index),
            ],
            # Phase-0 steps all map onto tile 0, so the accumulation pass never
            # writes a garbage block back (writeback fires only on block-index
            # change); phase 1 overwrites that block first.
            out_specs=pl.BlockSpec((1, c_pad, tile_n),
                                   lambda b, p, n: (b, 0, n * p)),
            scratch_shapes=scratch_shapes,
        ),
        compiler_params=pltpu.CompilerParams(
            dimension_semantics=("parallel", "arbitrary", "arbitrary"),
            vmem_limit_bytes=vmem_limit_bytes,
        ),
    )(gamma, x_flat)

    return out_flat[:, :C, :N].reshape(B, C, H, W)


def cam_reference(x, gamma, matmul_dtype=jnp.float32):
    B, C, H, W = x.shape
    xf = x.reshape(B, C, H * W)
    xm = xf.astype(matmul_dtype)
    energy = jnp.einsum("bcn,bdn->bcd", xm, xm,
                        preferred_element_type=jnp.float32)
    e_new = jnp.max(energy, axis=-1, keepdims=True) - energy
    attn = jax.nn.softmax(e_new, axis=-1)
    out = jnp.einsum("bcd,bdn->bcn", attn.astype(matmul_dtype), xm,
                     preferred_element_type=jnp.float32)
    return gamma[0] * out.reshape(B, C, H, W) + x


if __name__ == "__main__":
    key = jax.random.PRNGKey(0)
    B, C, H, W = 2, 4, 16, 16
    x = jax.random.normal(key, (B, C, H, W), dtype=jnp.float32)

    # Parameter init per module __init__: gamma = zeros(1).
    gamma = jnp.zeros((1,), dtype=jnp.float32)
    out = cam_module(x, gamma)                         # auto tile, slab path
    jax.block_until_ready(out)
    assert jnp.allclose(out, cam_reference(x, gamma), atol=1e-5), \
        float(jnp.max(jnp.abs(out - cam_reference(x, gamma))))

    # Non-trivial gamma.  Kernel matmuls use bf16 operands with f32
    # accumulation, so compare tightly against a bf16-matched reference and
    # loosely against the full-f32 reference.
    gamma_nz = jnp.array([0.7], dtype=jnp.float32)
    ref_bf16 = cam_reference(x, gamma_nz, matmul_dtype=jnp.bfloat16)
    ref_f32 = cam_reference(x, gamma_nz)

    # tile_n=128 -> two spatial tiles: exercises the energy accumulation and
    # the VMEM-slab reuse path.
    out_nz = cam_module(x, gamma_nz, tile_n=128)
    jax.block_until_ready(out_nz)
    assert jnp.allclose(out_nz, ref_bf16, atol=2e-2), \
        float(jnp.max(jnp.abs(out_nz - ref_bf16)))
    assert jnp.allclose(out_nz, ref_f32, atol=2e-1), \
        float(jnp.max(jnp.abs(out_nz - ref_f32)))

    # Same shape with the two-pass streaming fallback (slab disabled).
    out_stream = cam_module(x, gamma_nz, tile_n=128, use_slab=False)
    jax.block_until_ready(out_stream)
    assert jnp.allclose(out_stream, ref_bf16, atol=2e-2), \
        float(jnp.max(jnp.abs(out_stream - ref_bf16)))

    print("KERNEL_OK")
</pallas_src>

<mosaic_0001>
module attributes {stable_mosaic.version = 11 : i64} {
  func.func @kernel(%arg0: i32, %arg1: i32, %arg2: i32, %arg3: memref<1xf32, #tpu.memory_space<smem>>, %arg4: memref<1x8x256xf32, #tpu.memory_space<vmem>>, %arg5: memref<1x8x256xf32, #tpu.memory_space<vmem>>, %arg6: memref<8x8xf32, #tpu.memory_space<vmem>>, %arg7: memref<8x8xbf16, #tpu.memory_space<vmem>>, %arg8: memref<1x8x256xf32, #tpu.memory_space<vmem>>) attributes {dimension_semantics = [#tpu.dimension_semantics<parallel>, #tpu.dimension_semantics<arbitrary>, #tpu.dimension_semantics<arbitrary>], iteration_bounds = array<i64: 2, 2, 1>, scalar_prefetch = 0 : i64, scratch_operands = 3 : i64, tpu.core_type = #tpu.core_type<tc>, window_params = [{transform_indices = @transform_0, window_bounds = array<i64: 1>}, {transform_indices = @transform_1, window_bounds = array<i64: 1, 8, 256>}, {transform_indices = @transform_2, window_bounds = array<i64: 1, 8, 256>}]} {
    %c0_i32 = arith.constant 0 : i32
    %0 = arith.cmpi eq, %arg1, %c0_i32 : i32
    %c0_i32_0 = arith.constant 0 : i32
    %1 = arith.cmpi eq, %arg2, %c0_i32_0 : i32
    %2 = arith.andi %0, %1 : i1
    %3 = arith.extui %2 : i1 to i32
    %c0_i32_1 = arith.constant 0 : i32
    %4 = arith.cmpi ne, %3, %c0_i32_1 : i32
    scf.if %4 {
      %cst = arith.constant 0.000000e+00 : f32
      %16 = vector.broadcast %cst : f32 to vector<8x8xf32>
      %c0 = arith.constant 0 : index
      %c0_8 = arith.constant 0 : index
      %17 = vector.load %arg6[%c0, %c0_8] : memref<8x8xf32, #tpu.memory_space<vmem>>, vector<8x8xf32>
      tpu.vector_store %arg6[%c0, %c0_8], %16 {strides = array<i32>} : memref<8x8xf32, #tpu.memory_space<vmem>>, vector<8x8xf32>,
    } else {
    }
    %c0_i32_2 = arith.constant 0 : i32
    %5 = arith.cmpi eq, %arg1, %c0_i32_2 : i32
    %6 = arith.extui %5 : i1 to i32
    %c0_i32_3 = arith.constant 0 : i32
    %7 = arith.cmpi ne, %6, %c0_i32_3 : i32
    scf.if %7 {
      %c0 = arith.constant 0 : index
      %c0_8 = arith.constant 0 : index
      %c0_9 = arith.constant 0 : index
      %16 = vector.load %arg4[%c0, %c0_8, %c0_9] : memref<1x8x256xf32, #tpu.memory_space<vmem>>, vector<1x8x256xf32>
      %17 = vector.shape_cast %16 : vector<1x8x256xf32> to vector<8x256xf32>
      %18 = arith.index_cast %arg2 : i32 to index
      %c0_10 = arith.constant 0 : index
      %c0_11 = arith.constant 0 : index
      %19 = vector.load %arg8[%18, %c0_10, %c0_11] : memref<1x8x256xf32, #tpu.memory_space<vmem>>, vector<1x8x256xf32>
      %20 = vector.shape_cast %19 : vector<1x8x256xf32> to vector<8x256xf32>
      %21 = vector.shape_cast %17 : vector<8x256xf32> to vector<1x8x256xf32>
      tpu.vector_store %arg8[%18, %c0_10, %c0_11], %21 {strides = array<i32>} : memref<1x8x256xf32, #tpu.memory_space<vmem>>, vector<1x8x256xf32>,
      %22 = arith.truncf %17 : vector<8x256xf32> to vector<8x256xbf16>
      %c0_12 = arith.constant 0 : index
      %c0_13 = arith.constant 0 : index
      %23 = vector.load %arg6[%c0_12, %c0_13] : memref<8x8xf32, #tpu.memory_space<vmem>>, vector<8x8xf32>
      %cst = arith.constant dense<0.000000e+00> : vector<8x8xf32>
      %24 = tpu.matmul %22, %22, %cst {dimension_numbers = #tpu.dot_dimension_numbers<[1], [1], [0], [0], [0, 0, 1, 0], [], []>} : vector<8x256xbf16>, vector<8x256xbf16>, vector<8x8xf32> -> vector<8x8xf32>
      %25 = arith.addf %23, %24 : vector<8x8xf32>
      %c0_14 = arith.constant 0 : index
      %c0_15 = arith.constant 0 : index
      %26 = vector.load %arg6[%c0_14, %c0_15] : memref<8x8xf32, #tpu.memory_space<vmem>>, vector<8x8xf32>
      tpu.vector_store %arg6[%c0_14, %c0_15], %25 {strides = array<i32>} : memref<8x8xf32, #tpu.memory_space<vmem>>, vector<8x8xf32>,
    } else {
    }
    %c1_i32 = arith.constant 1 : i32
    %8 = arith.cmpi eq, %arg1, %c1_i32 : i32
    %c0_i32_4 = arith.constant 0 : i32
    %9 = arith.cmpi eq, %arg2, %c0_i32_4 : i32
    %10 = arith.andi %8, %9 : i1
    %11 = arith.extui %10 : i1 to i32
    %c0_i32_5 = arith.constant 0 : i32
    %12 = arith.cmpi ne, %11, %c0_i32_5 : i32
    scf.if %12 {
      %c0 = arith.constant 0 : index
      %c0_8 = arith.constant 0 : index
      %16 = vector.load %arg6[%c0, %c0_8] : memref<8x8xf32, #tpu.memory_space<vmem>>, vector<8x8xf32>
      %17 = tpu.iota {dimensions = array<i32: 1>} : vector<8x8xi32>
      %c4_i32 = arith.constant 4 : i32
      %18 = vector.broadcast %c4_i32 : i32 to vector<8x8xi32>
      %19 = arith.cmpi slt, %17, %18 : vector<8x8xi32>
      %cst = arith.constant 0x7F800000 : f32
      %20 = vector.broadcast %cst : f32 to vector<8x8xf32>
      %21 = arith.select %19, %16, %20 : vector<8x8xi1>, vector<8x8xf32>
      %cst_9 = arith.constant dense<0x7F800000> : vector<8xf32>
      %22 = vector.multi_reduction <minimumf>, %21, %cst_9 [1] : vector<8x8xf32> to vector<8xf32>
      %23 = vector.shape_cast %22 : vector<8xf32> to vector<8x1xf32>
      %24 = vector.broadcast %23 : vector<8x1xf32> to vector<8x8xf32>
      %25 = arith.subf %24, %21 : vector<8x8xf32>
      %26 = math.exp %25 : vector<8x8xf32>
      %cst_10 = arith.constant dense<0.000000e+00> : vector<8xf32>
      %27 = vector.multi_reduction <add>, %26, %cst_10 [1] : vector<8x8xf32> to vector<8xf32>
      %28 = vector.shape_cast %27 : vector<8xf32> to vector<8x1xf32>
      %29 = tpu.reciprocal %28 {approx = true} : vector<8x1xf32> -> vector<8x1xf32>
      %30 = vector.broadcast %29 : vector<8x1xf32> to vector<8x8xf32>
      %31 = arith.mulf %26, %30 : vector<8x8xf32>
      %c0_11 = arith.constant 0 : index
      %32 = memref.load %arg3[%c0_11] : memref<1xf32, #tpu.memory_space<smem>>
      %33 = vector.broadcast %32 : f32 to vector<8x8xf32>
      %34 = arith.mulf %33, %31 : vector<8x8xf32>
      %35 = arith.truncf %34 : vector<8x8xf32> to vector<8x8xbf16>
      %c0_12 = arith.constant 0 : index
      %c0_13 = arith.constant 0 : index
      %36 = vector.load %arg7[%c0_12, %c0_13] : memref<8x8xbf16, #tpu.memory_space<vmem>>, vector<8x8xbf16>
      tpu.vector_store %arg7[%c0_12, %c0_13], %35 {strides = array<i32>} : memref<8x8xbf16, #tpu.memory_space<vmem>>, vector<8x8xbf16>,
    } else {
    }
    %c1_i32_6 = arith.constant 1 : i32
    %13 = arith.cmpi eq, %arg1, %c1_i32_6 : i32
    %14 = arith.extui %13 : i1 to i32
    %c0_i32_7 = arith.constant 0 : i32
    %15 = arith.cmpi ne, %14, %c0_i32_7 : i32
    scf.if %15 {
      %16 = arith.index_cast %arg2 : i32 to index
      %c0 = arith.constant 0 : index
      %c0_8 = arith.constant 0 : index
      %17 = vector.load %arg8[%16, %c0, %c0_8] : memref<1x8x256xf32, #tpu.memory_space<vmem>>, vector<1x8x256xf32>
      %18 = vector.shape_cast %17 : vector<1x8x256xf32> to vector<8x256xf32>
      %c0_9 = arith.constant 0 : index
      %c0_10 = arith.constant 0 : index
      %19 = vector.load %arg7[%c0_9, %c0_10] : memref<8x8xbf16, #tpu.memory_space<vmem>>, vector<8x8xbf16>
      %20 = arith.truncf %18 : vector<8x256xf32> to vector<8x256xbf16>
      %cst = arith.constant dense<0.000000e+00> : vector<8x256xf32>
      %21 = tpu.matmul %19, %20, %cst {dimension_numbers = #tpu.dot_dimension_numbers<[1], [0], [0], [1], [0, 0, 1, 1], [], []>} : vector<8x8xbf16>, vector<8x256xbf16>, vector<8x256xf32> -> vector<8x256xf32>
      %22 = arith.addf %21, %18 : vector<8x256xf32>
      %c0_11 = arith.constant 0 : index
      %c0_12 = arith.constant 0 : index
      %c0_13 = arith.constant 0 : index
      %23 = vector.load %arg5[%c0_11, %c0_12, %c0_13] : memref<1x8x256xf32, #tpu.memory_space<vmem>>, vector<1x8x256xf32>
      %24 = vector.shape_cast %23 : vector<1x8x256xf32> to vector<8x256xf32>
      %25 = vector.shape_cast %22 : vector<8x256xf32> to vector<1x8x256xf32>
      tpu.vector_store %arg5[%c0_11, %c0_12, %c0_13], %25 {strides = array<i32>} : memref<1x8x256xf32, #tpu.memory_space<vmem>>, vector<1x8x256xf32>,
    } else {
    }
    return
  }
  func.func @transform_0(%arg0: i32, %arg1: i32, %arg2: i32) -> i32 {
    %c0_i32 = arith.constant 0 : i32
    %c0_i32_0 = arith.constant 0 : i32
    return %c0_i32 : i32
  }
  func.func @transform_1(%arg0: i32, %arg1: i32, %arg2: i32) -> (i32, i32, i32) {
    %c1_i32 = arith.constant 1 : i32
    %0 = arith.subi %c1_i32, %arg1 : i32
    %1 = arith.muli %arg2, %0 : i32
    %c0_i32 = arith.constant 0 : i32
    %2 = arith.muli %c0_i32, %arg1 : i32
    %3 = arith.addi %1, %2 : i32
    %c0_i32_0 = arith.constant 0 : i32
    %c0_i32_1 = arith.constant 0 : i32
    return %arg0, %c0_i32_0, %3 : i32, i32, i32
  }
  func.func @transform_2(%arg0: i32, %arg1: i32, %arg2: i32) -> (i32, i32, i32) {
    %0 = arith.muli %arg2, %arg1 : i32
    %c0_i32 = arith.constant 0 : i32
    %c0_i32_0 = arith.constant 0 : i32
    return %arg0, %c0_i32, %0 : i32, i32, i32
  }
}

</mosaic_0001>

<llo_original>
// kernel: tpu_custom_call.1
$region0: #{tpu_custom_call.1}
  #allocation0 [shape = 'u32[]', space=smem, size = 0x4, offset = 0x4, fixed_abs, tag = 'smem constant byte address 0x4 - core index']
  #allocation1 [shape = 'u32[144,128]{1,0:T(1,128)}', space=vmem, size = 0x12000, scoped, tag = 'internal scratch']
  #allocation2 [shape = 'f32[8,8]{1,0:T(8,128)}', space=vmem, size = 0x1000, scoped, tag = 'scratch operand']
  #allocation3 [shape = 'bf16[8,8]{1,0:T(8,128)(2,1)}', space=vmem, size = 0x800, scoped, tag = 'scratch operand']
  #allocation4 [shape = 'f32[1,8,256]{2,1,0:T(8,128)}', space=vmem, size = 0x2000, scoped, tag = 'scratch operand']
  #allocation5 [shape = 'f32[1]{0:T(128)S(6)}', space=smem, size = 0x200, scoped, tag = 'scoped memory for tpu_custom_call.1']
  %s0 = inlined_call_operand.<no memory space> [shape: f32[1], index: 0, kind: input, shape index: {}]
  %s1 = inlined_call_operand.hbm [shape: f32[2,8,256], index: 1, kind: input, shape index: {}]
  %s2 = inlined_call_operand.hbm [shape: f32[2,8,256], index: 2, kind: output, shape index: {}]
  %s3 = sld [smem:[#allocation0]]
  $region61: #{tpu_custom_call.1} parent=0
    _
  %s5 = ssub.s32 1, %s3
  %s6 = scalar_select 0, %s5, %s3
  %7 = sst [smem:[#allocation5]] %s0
  $region1: #{tpu_custom_call.1} parent=0
    #allocation6 [shape = 'u8[16384]{0}', space=vmem, size = 0x4000, scoped, tag = 'input window, operand 1']
    #allocation7 [shape = 's32[2]{0}', space=sflag, size = 0x8, scoped, tag = 'scoped memory for tpu_custom_call.1']
    #allocation8 [shape = 's32[2]{0}', space=sflag, size = 0x8, scoped, tag = 'scoped memory for tpu_custom_call.1']
    #allocation9 [shape = 'u8[16384]{0}', space=vmem, size = 0x4000, scoped, tag = 'output window, operand 0']
    %8 = vsyncpa [#allocation7], 0
    %s9 = scalar_lea.sflag [#allocation7], 1
    %10 = vsyncpa %s9, 0
    %11 = vsyncpa [#allocation8], 0
    %s12 = scalar_lea.sflag [#allocation8], 1
    %13 = vsyncpa %s12, 0
    loop: start=0, step=1, limit=6
    $region2: #{tpu_custom_call.1} parent=1 // loop_pre_header
      _
    $region3: #{tpu_custom_call.1} parent=1 // loop_header
      %s15 = sphi 0, %s19
      %p16 = scmp.ge.s32.totalorder %s15, 6
      %s22 = sphi 0, %s41
      %s23 = sphi 0, %s37
      %s24 = sphi 0, %s33
      %s25 = sphi 0, %s22
      %s26 = sphi 0, %s23
      %s27 = sphi 0, %s24
      %s28 = sphi 0, %s25
      %s29 = sphi 0, %s26
      %s30 = sphi 0, %s27
      %s42 = sphi 0, %s42
      %s44 = sphi 0, %s42
      %s45 = sphi 0, %s44
      %s59 = sphi 0, %s45
      %s71 = sphi 0, %s73
      %s74 = sphi 0, %s71
      %s75 = sphi 0, %s74
      %s91 = sphi 0, %s75
      %s101 = sphi 0, %s103
      %s104 = sphi 0, %s101
      %s105 = sphi 0, %s104
      %s121 = sphi 0, %s105
    $region4: #{tpu_custom_call.1} parent=1 // loop_header_branch
      %18 = sbr.rel (%p16) target = $region8
    $region5: #{tpu_custom_call.1} parent=1 // loop_body
      %s20 = ssub.s32 %s15, 1
      %s21 = ssub.s32 %s15, 2
      %s31 = sadd.s32 1, %s24
      %p32 = scmp.ge.s32.totalorder %s31, 1
      %s33 = scalar_select %p32, 0, %s31
      %s34 = sadd.s32 1, %s23
      %s35 = scalar_select %p32, %s34, %s23
      %p36 = scmp.ge.s32.totalorder %s35, 2
      %s37 = scalar_select %p36, 0, %s35
      %s38 = sadd.s32 1, %s22
      %s39 = scalar_select %p36, %s38, %s22
      %p40 = scmp.ge.s32.totalorder %s39, 2
      %s41 = scalar_select %p40, 0, %s39
      %s43 = sadd.s32 %s42, 1
      %p46 = scmp.eq.s32.totalorder %s15, 3
      %p47 = scmp.ne.s32.totalorder %s42, %s44
      %p48 = scmp.eq.s32.totalorder %s15, 0
      %p49 = por %p47, %p48
      %p50 = scmp.ne.s32.totalorder %s42, %s44
      %p51 = scmp.eq.s32.totalorder %s20, 3
      %p52 = por %p50, %p51
      %p53 = scmp.ne.s32.totalorder %s44, %s45
      %p54 = scmp.eq.s32.totalorder %s20, 0
      %p55 = por %p53, %p54
      %p56 = scmp.ne.s32.totalorder %s44, %s45
      %p57 = scmp.eq.s32.totalorder %s21, 3
      %p58 = por %p56, %p57
      %p60 = scmp.ne.s32.totalorder %s45, %s59
      %p61 = scmp.eq.s32.totalorder %s21, 0
      %p62 = por %p60, %p61
      %s63 = ssub.s32 1, %s23
      %s64 = smul.u32 %s24, %s63
      %s65 = ssub.s32 1, %s37
      %s66 = smul.u32 %s33, %s65
      %s67 = ssub.s32 %s22, %s41
      %s68 = ssub.s32 %s64, %s66
      %s69 = sor.u32 %s67, %s68
      %p70 = scmp.eq.s32.totalorder %s69, 0
      %s72 = sadd.s32 %s71, 1
      %s73 = scalar_select %p70, %s71, %s72
      %p76 = pneg %p70
      %p77 = scmp.eq.s32.totalorder %s15, 3
      %p78 = por %p76, %p77
      %p79 = scmp.ne.s32.totalorder %s71, %s74
      %p80 = scmp.eq.s32.totalorder %s15, 0
      %p81 = por %p79, %p80
      %p82 = scmp.ne.s32.totalorder %s71, %s74
      %p83 = scmp.eq.s32.totalorder %s20, 3
      %p84 = por %p82, %p83
      %p85 = scmp.ne.s32.totalorder %s74, %s75
      %p86 = scmp.eq.s32.totalorder %s20, 0
      %p87 = por %p85, %p86
      %p88 = scmp.ne.s32.totalorder %s74, %s75
      %p89 = scmp.eq.s32.totalorder %s21, 3
      %p90 = por %p88, %p89
      %p92 = scmp.ne.s32.totalorder %s75, %s91
      %p93 = scmp.eq.s32.totalorder %s21, 0
      %p94 = por %p92, %p93
      %s95 = smul.u32 %s24, %s23
      %s96 = smul.u32 %s33, %s37
      %s97 = ssub.s32 %s22, %s41
      %s98 = ssub.s32 %s95, %s96
      %s99 = sor.u32 %s97, %s98
      %p100 = scmp.eq.s32.totalorder %s99, 0
      %s102 = sadd.s32 %s101, 1
      %s103 = scalar_select %p100, %s101, %s102
      %p106 = pneg %p100
      %p107 = scmp.eq.s32.totalorder %s15, 3
      %p108 = por %p106, %p107
      %p109 = scmp.ne.s32.totalorder %s101, %s104
      %p110 = scmp.eq.s32.totalorder %s15, 0
      %p111 = por %p109, %p110
      %p112 = scmp.ne.s32.totalorder %s101, %s104
      %p113 = scmp.eq.s32.totalorder %s20, 3
      %p114 = por %p112, %p113
      %p115 = scmp.ne.s32.totalorder %s104, %s105
      %p116 = scmp.eq.s32.totalorder %s20, 0
      %p117 = por %p115, %p116
      %p118 = scmp.ne.s32.totalorder %s104, %s105
      %p119 = scmp.eq.s32.totalorder %s21, 3
      %p120 = por %p118, %p119
      %p122 = scmp.ne.s32.totalorder %s105, %s121
      %p123 = scmp.eq.s32.totalorder %s21, 0
      %p124 = por %p122, %p123
      %p125 = scmp.le.s32.totalorder 1, %s15
      %p126 = scmp.lt.s32.totalorder %s15, 5
      %p127 = pnand %p125, %p126
      %p128 = pneg %p127
      // Predicated region
      $region9: #{tpu_custom_call.1} parent=5 // pred_check
        _
      $region10: #{tpu_custom_call.1} parent=5 // pred_check_branch
        %130 = sbr.rel (%p127) target = $region12
      $region11: #{tpu_custom_call.1} parent=5 // pred_region
        %s131 = ssub.s32 %s15, 1
        // Predicated region
        $region13: #{tpu_custom_call.1} parent=11 // pred_check
          %p132 = pneg %p55
        $region14: #{tpu_custom_call.1} parent=11 // pred_check_branch
          %134 = sbr.rel (%p132) target = $region16
        $region15: #{tpu_custom_call.1} parent=11 // pred_region
          _
        $region16: #{tpu_custom_call.1} parent=11 // pred_fallthru
          _
      $region12: #{tpu_custom_call.1} parent=5 // pred_fallthru
        _
      %p135 = scmp.lt.s32.totalorder %s15, 4
      // Predicated region
      $region17: #{tpu_custom_call.1} parent=5 // pred_check
        %p136 = pneg %p135
      $region18: #{tpu_custom_call.1} parent=5 // pred_check_branch
        %138 = sbr.rel (%p136) target = $region20
      $region19: #{tpu_custom_call.1} parent=5 // pred_region
        // Predicated region
        $region21: #{tpu_custom_call.1} parent=19 // pred_check
          %p139 = pneg %p81
        $region22: #{tpu_custom_call.1} parent=19 // pred_check_branch
          %141 = sbr.rel (%p139) target = $region24
        $region23: #{tpu_custom_call.1} parent=19 // pred_region
          %s142 = sand.u32 %s71, 1
          %s143 = scalar_lea.sflag [#allocation7], %s142
          %s144 = sand.u32 %s71, 1
          %s145 = smul.addr %s144, 16
          %s146 = scalar_lea.vmem [#allocation6], %s145
          %s147 = ssub.s32 1, %s23
          %s148 = smul.u32 %s24, %s147
          %s149 = smul.u32 2, %s148
          %s151 = ssub.s32 256, 256
          %152 = vsyncadd %s143, %s151
          %s153 = smul.addr %s22, 2
          %s154 = sadd.s32 %s149, %s153
          %s155 = smul.addr %s154, 128
          %s156 = scalar_lea.hbm %s1, %s155
          %s158 = sshll.u32 %s146, 4
          %s159 = int_to_ptr.vmem [resolvable:$true] %s158
          %161 = dma.hbm_to_vmem [thread:$0]  %s156, 256, %s159, %s143
        $region24: #{tpu_custom_call.1} parent=19 // pred_fallthru
          _
      $region20: #{tpu_custom_call.1} parent=5 // pred_fallthru
        _
      %p162 = scmp.le.s32.totalorder 1, %s15
      %p163 = scmp.lt.s32.totalorder %s15, 5
      %p164 = pnand %p162, %p163
      %p165 = pneg %p164
      // Predicated region
      $region25: #{tpu_custom_call.1} parent=5 // pred_check
        _
      $region26: #{tpu_custom_call.1} parent=5 // pred_check_branch
        %167 = sbr.rel (%p164) target = $region28
      $region27: #{tpu_custom_call.1} parent=5 // pred_region
        %s168 = ssub.s32 %s15, 1
        %s169 = sand.u32 %s74, 1
        %s170 = scalar_lea.sflag [#allocation7], %s169
        %s171 = sand.u32 %s74, 1
        %s172 = smul.addr %s171, 16
        %s173 = scalar_lea.vmem [#allocation6], %s172
        // Predicated region
        $region29: #{tpu_custom_call.1} parent=27 // pred_check
          %p174 = pneg %p87
        $region30: #{tpu_custom_call.1} parent=27 // pred_check_branch
          %176 = sbr.rel (%p174) target = $region32
        $region31: #{tpu_custom_call.1} parent=27 // pred_region
          %177 = dma.done %s170, 256
        $region32: #{tpu_custom_call.1} parent=27 // pred_fallthru
          _
        %p178 = pneg %p55
        %p179 = pneg %p52
        %s180 = sand.u32 %s74, 1
        %s181 = scalar_lea.sflag [#allocation7], %s180
        %s182 = sand.u32 %s74, 1
        %s183 = smul.addr %s182, 16
        %s184 = scalar_lea.vmem [#allocation6], %s183
        %p185 = pneg %p87
        %p186 = pneg %p84
        %p187 = pneg %p117
        %p188 = pneg %p114
        %s189 = sand.u32 %s104, 1
        %s190 = scalar_lea.sflag [#allocation8], %s189
        %s191 = sand.u32 %s104, 1
        %s192 = smul.addr %s191, 16
        %s193 = scalar_lea.vmem [#allocation9], %s192
        %s194 = ssub.s32 1, %s26
        %s195 = smul.u32 %s27, %s194
        %s196 = smul.u32 2, %s195
        %s197 = smul.u32 %s27, %s26
        %s198 = smul.u32 2, %s197
        %p200 = scmp.eq.s32.totalorder %s26, 0
        %p201 = scmp.eq.s32.totalorder %s27, 0
        %p202 = pnand %p200, %p201
        %p203 = pneg %p202
        // Predicated region
        $region33: #{tpu_custom_call.1} parent=27 // pred_check
          _
        $region34: #{tpu_custom_call.1} parent=27 // pred_check_branch
          %205 = sbr.rel (%p202) target = $region36
        $region35: #{tpu_custom_call.1} parent=27 // pred_region
          %vm206 = vcmask 64512
          %207 = vst.msk [vmem:[#allocation2] sm:$0xff] %vm206, 0.0
        $region36: #{tpu_custom_call.1} parent=27 // pred_fallthru
          _
        // Predicated region
        $region37: #{tpu_custom_call.1} parent=27 // pred_check
          %p208 = pneg %p200
        $region38: #{tpu_custom_call.1} parent=27 // pred_check_branch
          %210 = sbr.rel (%p208) target = $region40
        $region39: #{tpu_custom_call.1} parent=27 // pred_region
          %v211 = vld [vmem:[%s173] sm:$0xff]
          %v212 = vld [vmem:[%s173 + $0x8] sm:$0xff]
          %s213 = smul.u32 %s27, 2
          %s214 = smul.addr %s213, 8
          %s215 = scalar_lea.vmem [#allocation4], %s214
          %216 = vst [vmem:[%s215] sm:$0xff] %v211
          %217 = vst [vmem:[%s215 + $0x8] sm:$0xff] %v212
          %v218 = vpack.c.bf16 %v211, %v211
          %v219 = vpack.c.bf16 %v212, %v212
          %v220 = vld [vmem:[#allocation2] sm:$0xff]
          %221 = vmatprep.subr.bf16.mxu0 %v219
          %222 = vmatpush1.bf16.xpose.msra.mxu0 %v218
          %223 = vmatprep.subr.bf16.mxu0 0
          %224 = vmatpush1.bf16.xpose.msra.mxu0 0
          %225 = vmatprep.subr.bf16.mxu0 0
          %226 = vmatpush1.bf16.xpose.msra.mxu0 0
          %227 = vmatprep.subr.bf16.mxu0 0
          %228 = vmatpush1.bf16.xpose.msra.mxu0 0
          %229 = vmatprep.subr.bf16.mxu0 0
          %230 = vmatpush1.bf16.xpose.msra.mxu0 0
          %231 = vmatprep.subr.bf16.mxu0 0
          %232 = vmatpush1.bf16.xpose.msra.mxu0 0
          %233 = vmatprep.subr.bf16.mxu0 0
          %234 = vmatpush1.bf16.xpose.msra.mxu0 0
          %235 = vmatprep.subr.bf16.mxu0 0
          %236 = vmatpush1.bf16.xpose.msra.mxu0 0
          %237 = vmatprep.subr.bf16.mxu0 0
          %238 = vmatpush1.bf16.xpose.msra.mxu0 0
          %239 = vmatprep.subr.bf16.mxu0 0
          %240 = vmatpush1.bf16.xpose.msra.mxu0 0
          %241 = vmatprep.subr.bf16.mxu0 0
          %242 = vmatpush1.bf16.xpose.msra.mxu0 0
          %243 = vmatprep.subr.bf16.mxu0 0
          %244 = vmatpush1.bf16.xpose.msra.mxu0 0
          %245 = vmatprep.subr.bf16.mxu0 0
          %246 = vmatpush1.bf16.xpose.msra.mxu0 0
          %247 = vmatprep.subr.bf16.mxu0 0
          %248 = vmatpush1.bf16.xpose.msra.mxu0 0
          %249 = vmatprep.subr.bf16.mxu0 0
          %250 = vmatpush1.bf16.xpose.msra.mxu0 0
          %251 = vmatprep.subr.bf16.mxu0 0
          %252 = vmatpush1.bf16.xpose.msra.mxu0 0
          %253 = vmatprep.mubr.bf16.mxu0 %v219
          %254 = vmatmul.mubr.bf16.gmra.mrb[0].mxu0 %v218
          %v255 = vpop.f32.mrb[0].mxu0
          %v256 = vadd.f32 0.0, %v255
          %v257 = vpop.f32.mrb[0].mxu0
          %v258 = vpop.f32.mrb[0].mxu0
          %v259 = vpop.f32.mrb[0].mxu0
          %260 = vdwg.mxu0
          %v261 = vadd.f32 %v220, %v256
          %vm262 = vcmask 64512
          %263 = vst.msk [vmem:[#allocation2] sm:$0xff] %vm262, %v261
        $region40: #{tpu_custom_call.1} parent=27 // pred_fallthru
          _
        %p264 = scmp.eq.s32.totalorder %s26, 1
        %p265 = pnand %p264, %p201
        %p266 = pneg %p265
        // Predicated region
        $region41: #{tpu_custom_call.1} parent=27 // pred_check
          _
        $region42: #{tpu_custom_call.1} parent=27 // pred_check_branch
          %268 = sbr.rel (%p265) target = $region44
        $region43: #{tpu_custom_call.1} parent=27 // pred_region
          %v269 = vld [vmem:[#allocation2] sm:$0xff]
          %v270 = vlaneseq
          %v271 = vand.u32 %v270, 127
          %vm272 = vcmp.lt.s32.totalorder %v271, 4
          %v273 = vsel %vm272, %v269, inf
          %vm274 = vcmask 64512
          %v275 = vsel %vm274, %v273, inf
          %276 = vmin.xlane.f32.xlu0 %v275
          %v277 = vpop.xlane.xlu0 %276
          %v278 = vsub.f32 %v277, %v273
          %v279 = vmul.f32 %v278, 1.442695
          %v280 = vpow.pop %v279
          %v281 = vsel %vm274, %v280, 0.0
          %282 = vadd.xlane.f32.xlu0 %v281
          %v283 = vpop.xlane.xlu0 %282
          %v284 = vrcp.pop %v283
          %v285 = vmul.f32 %v280, %v284
          %s286 = sld [smem:[#allocation5]]
          %v287 = vstv %s286
          %v288 = vmul.f32 %v287, %v285
          %v289 = vpack.c.bf16 %v288, %v288
          %vm290 = vcmask 60416
          %291 = vst.msk [vmem:[#allocation3] sm:$0xf] %vm290, %v289
        $region44: #{tpu_custom_call.1} parent=27 // pred_fallthru
          _
        // Predicated region
        $region45: #{tpu_custom_call.1} parent=27 // pred_check
          %p292 = pneg %p264
        $region46: #{tpu_custom_call.1} parent=27 // pred_check_branch
          %294 = sbr.rel (%p292) target = $region48
        $region47: #{tpu_custom_call.1} parent=27 // pred_region
          %s295 = smul.u32 %s27, 2
          %s296 = smul.addr %s295, 8
          %s297 = scalar_lea.vmem [#allocation4], %s296
          %v298 = vld [vmem:[%s297] sm:$0xff]
          %v299 = vld [vmem:[%s297 + $0x8] sm:$0xff]
          %v300 = vld [vmem:[#allocation3] sm:$0xf]
          %v301 = vpack.c.bf16 %v298, %v298
          %v302 = vpack.c.bf16 %v299, %v299
          %vm303 = vcmask 64512
          %v305 = vsel %vm303, %v300, 0
          %vm307 = vcmask 1043456
          %v309 = vsel %vm307, %v301, 0
          %v312 = vsel %vm307, %v302, 0
          %314 = vmatprep.subr.bf16.mxu0 %v312
          %315 = vmatpush1.bf16.msra.mxu0 %v309
          %316 = vmatprep.subr.bf16.mxu0 0
          %317 = vmatpush1.bf16.msra.mxu0 0
          %318 = vmatprep.subr.bf16.mxu0 0
          %319 = vmatpush1.bf16.msra.mxu0 0
          %320 = vmatprep.subr.bf16.mxu0 0
          %321 = vmatpush1.bf16.msra.mxu0 0
          %322 = vmatprep.subr.bf16.mxu0 0
          %323 = vmatpush1.bf16.msra.mxu0 0
          %324 = vmatprep.subr.bf16.mxu0 0
          %325 = vmatpush1.bf16.msra.mxu0 0
          %326 = vmatprep.subr.bf16.mxu0 0
          %327 = vmatpush1.bf16.msra.mxu0 0
          %328 = vmatprep.subr.bf16.mxu0 0
          %329 = vmatpush1.bf16.msra.mxu0 0
          %330 = vmatprep.subr.bf16.mxu0 0
          %331 = vmatpush1.bf16.msra.mxu0 0
          %332 = vmatprep.subr.bf16.mxu0 0
          %333 = vmatpush1.bf16.msra.mxu0 0
          %334 = vmatprep.subr.bf16.mxu0 0
          %335 = vmatpush1.bf16.msra.mxu0 0
          %336 = vmatprep.subr.bf16.mxu0 0
          %337 = vmatpush1.bf16.msra.mxu0 0
          %338 = vmatprep.subr.bf16.mxu0 0
          %339 = vmatpush1.bf16.msra.mxu0 0
          %340 = vmatprep.subr.bf16.mxu0 0
          %341 = vmatpush1.bf16.msra.mxu0 0
          %342 = vmatprep.subr.bf16.mxu0 0
          %343 = vmatpush1.bf16.msra.mxu0 0
          %344 = vmatprep.subr.bf16.mxu0 0
          %345 = vmatpush1.bf16.msra.mxu0 0
          %346 = vmatprep.mubr.bf16.mxu0 0
          %347 = vmatmul.mubr.bf16.gmra.mrb[0].mxu0 %v305
          %v348 = vpop.f32.mrb[0].mxu0
          %v349 = vadd.f32 %v298, %v348
          %v350 = vpop.f32.mrb[0].mxu0
          %v351 = vadd.f32 %v299, %v350
          %v352 = vpop.f32.mrb[0].mxu0
          %v353 = vpop.f32.mrb[0].mxu0
          %354 = vdwg.mxu0
          %355 = vst [vmem:[%s193] sm:$0xff] %v349
          %356 = vst [vmem:[%s193 + $0x8] sm:$0xff] %v351
        $region48: #{tpu_custom_call.1} parent=27 // pred_fallthru
          _
        %s357 = sand.u32 %s104, 1
        %s358 = scalar_lea.sflag [#allocation8], %s357
        %s359 = sand.u32 %s104, 1
        %s360 = smul.addr %s359, 16
        %s361 = scalar_lea.vmem [#allocation9], %s360
        // Predicated region
        $region49: #{tpu_custom_call.1} parent=27 // pred_check
          %p362 = pneg %p114
        $region50: #{tpu_custom_call.1} parent=27 // pred_check_branch
          %364 = sbr.rel (%p362) target = $region52
        $region51: #{tpu_custom_call.1} parent=27 // pred_region
          %s365 = smul.u32 %s27, %s26
          %s366 = smul.u32 2, %s365
          %s368 = ssub.s32 256, 256
          %369 = vsyncadd %s358, %s368
          %s370 = smul.addr %s25, 2
          %s371 = sadd.s32 %s366, %s370
          %s372 = smul.addr %s371, 128
          %s373 = scalar_lea.hbm %s2, %s372
          %s375 = sshll.u32 %s361, 4
          %s376 = int_to_ptr.vmem [resolvable:$true] %s375
          %378 = dma.vmem_to_hbm [thread:$0]  %s376, 256, %s373, %s358
        $region52: #{tpu_custom_call.1} parent=27 // pred_fallthru
          _
      $region28: #{tpu_custom_call.1} parent=5 // pred_fallthru
        _
      %p379 = scmp.le.s32.totalorder 2, %s15
      // Predicated region
      $region53: #{tpu_custom_call.1} parent=5 // pred_check
        %p380 = pneg %p379
      $region54: #{tpu_custom_call.1} parent=5 // pred_check_branch
        %382 = sbr.rel (%p380) target = $region56
      $region55: #{tpu_custom_call.1} parent=5 // pred_region
        %s383 = ssub.s32 %s15, 2
        // Predicated region
        $region57: #{tpu_custom_call.1} parent=55 // pred_check
          %p384 = pneg %p120
        $region58: #{tpu_custom_call.1} parent=55 // pred_check_branch
          %386 = sbr.rel (%p384) target = $region60
        $region59: #{tpu_custom_call.1} parent=55 // pred_region
          %s387 = sand.u32 %s105, 1
          %s388 = scalar_lea.sflag [#allocation8], %s387
          %s389 = sand.u32 %s105, 1
          %s390 = smul.addr %s389, 16
          %s391 = scalar_lea.vmem [#allocation9], %s390
          %392 = dma.done %s388, 256
        $region60: #{tpu_custom_call.1} parent=55 // pred_fallthru
          _
      $region56: #{tpu_custom_call.1} parent=5 // pred_fallthru
        _
    $region6: #{tpu_custom_call.1} parent=1 // loop_footer
      %s19 = sadd.s32 1, %s15
    $region7: #{tpu_custom_call.1} parent=1 // loop_footer_branch
      %14 = sbr.rel target = $region3
    $region8: #{tpu_custom_call.1} parent=1 // loop_exit
      _
    %393 = vsyncpa [#allocation7], 1
    %s394 = scalar_lea.sflag [#allocation7], 1
    %395 = vsyncpa %s394, 1
    %396 = vsyncpa [#allocation8], 1
    %s397 = scalar_lea.sflag [#allocation8], 1
    %398 = vsyncpa %s397, 1

</llo_original>
